<compile_context>
chip_gen: v7x
topology: tpu7x:2x2x1
jax: 0.10.0
libtpu: 0.0.40
codegen_flags: <defaults>
</compile_context>

<pallas_src>
import jax
import jax.numpy as jnp
import numpy as np
from jax.experimental import pallas as pl
from jax.experimental.pallas import tpu as pltpu


# ---------------------------------------------------------------------------
# Transform definitions. They operate on a (rows, HW) slab; the contrast mean
# is a per-row (= per-channel, per-image) spatial reduction over axis=-1.
# ---------------------------------------------------------------------------
def _fn_invert(x):
    return 1.0 - x


def _fn_contrast(x):
    m = jnp.mean(x, axis=-1, keepdims=True)
    return (x - m) * 1.5 + m


def _fn_brightness(x):
    return jnp.clip(x + 0.2, 0.0, 1.0)


_FUNCTIONS = (_fn_invert, _fn_contrast, _fn_brightness)
_PROBABILITIES = (0.5, 0.5, 0.3)
_NUM_FNS = len(_FUNCTIONS)


def make_selection_masks(key, n):
    """torch.rand(n).le(prob) per function, drawn once up front (deterministic)."""
    keys = jax.random.split(key, _NUM_FNS)
    return jnp.stack(
        [
            (jax.random.uniform(keys[f], (n,)) <= p).astype(jnp.int32)
            for f, p in enumerate(_PROBABILITIES)
        ],
        axis=0,
    )  # (num_fns, n) int32


def _round_up(v, m):
    return ((v + m - 1) // m) * m


def _pick_row_tile(n_rows, row_bytes, target_bytes=2 << 20):
    """Rows per block: a multiple of 8 (full sublanes), ~target_bytes, and
    small enough that the grid has >= 2 steps when possible (v7x megacore)."""
    r8 = _round_up(n_rows, 8)
    tb = max(8, (target_bytes // max(row_bytes, 1)) // 8 * 8)
    tb = min(tb, r8)
    if r8 >= 16:  # guarantee at least 2 grid steps for v7x's two TensorCores
        tb = min(tb, max(8, (r8 // 2) // 8 * 8))
    return tb


def _kernel(x_ref, mask_ref, o_ref):
    # One fused pass: load block, chain predicated transforms, store block.
    y = x_ref[...].astype(jnp.float32)          # (TB_rows, HW)
    m = mask_ref[...]                           # (TB_rows, num_fns) int32
    for f, fn in enumerate(_FUNCTIONS):
        sel = m[:, f : f + 1] > 0               # (TB_rows, 1) row predicate
        # Sequential: each fn sees the (possibly transformed) result of the
        # previous one -> matches the PyTorch loop semantics exactly.
        y = jnp.where(sel, fn(y), y)
    o_ref[...] = y.astype(o_ref.dtype)


def random_transforms(tensor, masks):
    """Apply the fixed transform list to masked batch elements (Pallas)."""
    n, c, h, w = tensor.shape
    hw = h * w
    rows = n * c

    # Sublane/lane-dense layout: (N*C, H*W). Contrast mean stays per-row.
    x = tensor.reshape(rows, hw)
    # Per-batch masks repeated over channels -> per-row masks (rows, num_fns).
    row_masks = jnp.repeat(masks.astype(jnp.int32).T, c, axis=0)

    row_bytes = hw * x.dtype.itemsize
    tb = _pick_row_tile(rows, row_bytes)
    rows_pad = _round_up(rows, tb)
    if rows_pad != rows:
        x = jnp.pad(x, ((0, rows_pad - rows), (0, 0)))
        row_masks = jnp.pad(row_masks, ((0, rows_pad - rows), (0, 0)))
    grid = rows_pad // tb

    block_bytes = tb * hw * x.dtype.itemsize
    # Double-buffered in + out blocks (+ tiny mask blocks) plus headroom;
    # comfortably under v7x's 32 MiB default scoped / 64 MiB physical VMEM.
    vmem_limit = int(min(32 << 20, max(16 << 20, 6 * block_bytes + (1 << 20))))

    out = pl.pallas_call(
        _kernel,
        out_shape=jax.ShapeDtypeStruct((rows_pad, hw), x.dtype),
        grid=(grid,),
        in_specs=[
            pl.BlockSpec((tb, hw), lambda b: (b, 0)),
            pl.BlockSpec((tb, _NUM_FNS), lambda b: (b, 0)),
        ],
        out_specs=pl.BlockSpec((tb, hw), lambda b: (b, 0)),
        compiler_params=pltpu.CompilerParams(
            dimension_semantics=("parallel",),
            vmem_limit_bytes=vmem_limit,
        ),
    )(x, row_masks)

    return out[:rows].reshape(n, c, h, w)


# Pure-JAX reference (same masks), mirrors the PyTorch forward exactly.
def random_transforms_ref(tensor, masks):
    n, c, h, w = tensor.shape
    x = tensor.reshape(n, c, h * w).astype(jnp.float32)
    for f, fn in enumerate(_FUNCTIONS):
        sel = masks[f].astype(bool)[:, None, None]  # (N,1,1)
        x = jnp.where(sel, fn(x), x)
    return x.astype(tensor.dtype).reshape(n, c, h, w)


if __name__ == "__main__":
    key = jax.random.PRNGKey(0)
    k_data, k_mask = jax.random.split(key)

    # Small NCHW batch: N=2, C=4, H=W=16
    x = jax.random.uniform(k_data, (2, 4, 16, 16), dtype=jnp.float32)
    masks = make_selection_masks(k_mask, x.shape[0])

    ref = np.asarray(random_transforms_ref(x, masks))

    out = jax.block_until_ready(random_transforms(x, masks))
    np.testing.assert_allclose(np.asarray(out), ref, rtol=1e-5, atol=1e-5)

    print("KERNEL_OK")
</pallas_src>

<mosaic_0001>
module attributes {stable_mosaic.version = 11 : i64} {
  func.func @_kernel(%arg0: i32, %arg1: memref<8x256xf32, #tpu.memory_space<vmem>>, %arg2: memref<8x3xi32, #tpu.memory_space<vmem>>, %arg3: memref<8x256xf32, #tpu.memory_space<vmem>>) attributes {dimension_semantics = [#tpu.dimension_semantics<parallel>], iteration_bounds = array<i64: 1>, scalar_prefetch = 0 : i64, scratch_operands = 0 : i64, tpu.core_type = #tpu.core_type<tc>, window_params = [{transform_indices = @transform_0, window_bounds = array<i64: 8, 256>}, {transform_indices = @transform_1, window_bounds = array<i64: 8, 3>}, {transform_indices = @transform_2, window_bounds = array<i64: 8, 256>}]} {
    %c0 = arith.constant 0 : index
    %c0_0 = arith.constant 0 : index
    %0 = vector.load %arg1[%c0, %c0_0] : memref<8x256xf32, #tpu.memory_space<vmem>>, vector<8x256xf32>
    %c0_1 = arith.constant 0 : index
    %c0_2 = arith.constant 0 : index
    %1 = vector.load %arg2[%c0_1, %c0_2] : memref<8x3xi32, #tpu.memory_space<vmem>>, vector<8x3xi32>
    %2 = vector.extract_strided_slice %1 {offsets = [0, 0], sizes = [8, 1], strides = [1, 1]} : vector<8x3xi32> to vector<8x1xi32>
    %c0_i32 = arith.constant 0 : i32
    %3 = vector.broadcast %c0_i32 : i32 to vector<8x1xi32>
    %4 = arith.cmpi sgt, %2, %3 : vector<8x1xi32>
    %cst = arith.constant 1.000000e+00 : f32
    %5 = vector.broadcast %cst : f32 to vector<8x256xf32>
    %6 = arith.subf %5, %0 : vector<8x256xf32>
    %7 = vector.shape_cast %4 : vector<8x1xi1> to vector<8x1xi1>
    %8 = vector.broadcast %7 : vector<8x1xi1> to vector<8x256xi1>
    %9 = arith.select %8, %6, %0 : vector<8x256xi1>, vector<8x256xf32>
    %10 = vector.extract_strided_slice %1 {offsets = [0, 1], sizes = [8, 1], strides = [1, 1]} : vector<8x3xi32> to vector<8x1xi32>
    %c0_i32_3 = arith.constant 0 : i32
    %11 = vector.broadcast %c0_i32_3 : i32 to vector<8x1xi32>
    %12 = arith.cmpi sgt, %10, %11 : vector<8x1xi32>
    %cst_4 = arith.constant dense<0.000000e+00> : vector<8xf32>
    %13 = vector.multi_reduction <add>, %9, %cst_4 [1] : vector<8x256xf32> to vector<8xf32>
    %14 = vector.shape_cast %13 : vector<8xf32> to vector<8x1xf32>
    %cst_5 = arith.constant 2.560000e+02 : f32
    %15 = vector.broadcast %cst_5 : f32 to vector<8x1xf32>
    %16 = arith.divf %14, %15 : vector<8x1xf32>
    %17 = vector.broadcast %16 : vector<8x1xf32> to vector<8x256xf32>
    %18 = arith.subf %9, %17 : vector<8x256xf32>
    %cst_6 = arith.constant 1.500000e+00 : f32
    %19 = vector.broadcast %cst_6 : f32 to vector<8x256xf32>
    %20 = arith.mulf %18, %19 : vector<8x256xf32>
    %21 = vector.broadcast %16 : vector<8x1xf32> to vector<8x256xf32>
    %22 = arith.addf %20, %21 : vector<8x256xf32>
    %23 = vector.shape_cast %12 : vector<8x1xi1> to vector<8x1xi1>
    %24 = vector.broadcast %23 : vector<8x1xi1> to vector<8x256xi1>
    %25 = arith.select %24, %22, %9 : vector<8x256xi1>, vector<8x256xf32>
    %26 = vector.extract_strided_slice %1 {offsets = [0, 2], sizes = [8, 1], strides = [1, 1]} : vector<8x3xi32> to vector<8x1xi32>
    %c0_i32_7 = arith.constant 0 : i32
    %27 = vector.broadcast %c0_i32_7 : i32 to vector<8x1xi32>
    %28 = arith.cmpi sgt, %26, %27 : vector<8x1xi32>
    %cst_8 = arith.constant 2.000000e-01 : f32
    %29 = vector.broadcast %cst_8 : f32 to vector<8x256xf32>
    %30 = arith.addf %25, %29 : vector<8x256xf32>
    %cst_9 = arith.constant 0.000000e+00 : f32
    %cst_10 = arith.constant 1.000000e+00 : f32
    %31 = vector.broadcast %cst_9 : f32 to vector<8x256xf32>
    %32 = arith.maximumf %31, %30 : vector<8x256xf32>
    %33 = vector.broadcast %cst_10 : f32 to vector<8x256xf32>
    %34 = arith.minimumf %33, %32 : vector<8x256xf32>
    %35 = vector.shape_cast %28 : vector<8x1xi1> to vector<8x1xi1>
    %36 = vector.broadcast %35 : vector<8x1xi1> to vector<8x256xi1>
    %37 = arith.select %36, %34, %25 : vector<8x256xi1>, vector<8x256xf32>
    %c0_11 = arith.constant 0 : index
    %c0_12 = arith.constant 0 : index
    %38 = vector.load %arg3[%c0_11, %c0_12] : memref<8x256xf32, #tpu.memory_space<vmem>>, vector<8x256xf32>
    tpu.vector_store %arg3[%c0_11, %c0_12], %37 {strides = array<i32>} : memref<8x256xf32, #tpu.memory_space<vmem>>, vector<8x256xf32>,
    return
  }
  func.func @transform_0(%arg0: i32) -> (i32, i32) {
    %c0_i32 = arith.constant 0 : i32
    %c0_i32_0 = arith.constant 0 : i32
    return %arg0, %c0_i32 : i32, i32
  }
  func.func @transform_1(%arg0: i32) -> (i32, i32) {
    %c0_i32 = arith.constant 0 : i32
    %c0_i32_0 = arith.constant 0 : i32
    return %arg0, %c0_i32 : i32, i32
  }
  func.func @transform_2(%arg0: i32) -> (i32, i32) {
    %c0_i32 = arith.constant 0 : i32
    %c0_i32_0 = arith.constant 0 : i32
    return %arg0, %c0_i32 : i32, i32
  }
}

</mosaic_0001>

<llo_original>
// kernel: tpu_custom_call.1
$region0: #{tpu_custom_call.1}
  #allocation0 [shape = 'u32[]', space=smem, size = 0x4, offset = 0x4, fixed_abs, tag = 'smem constant byte address 0x4 - core index']
  #allocation1 [shape = 'u32[144,128]{1,0:T(1,128)}', space=vmem, size = 0x12000, scoped, tag = 'internal scratch']
  %s0 = inlined_call_operand.hbm [shape: f32[8,256], index: 0, kind: input, shape index: {}]
  %s1 = inlined_call_operand.vmem [shape: s32[8,3], index: 1, kind: input, shape index: {}]
  %s2 = inlined_call_operand.hbm [shape: f32[8,256], index: 2, kind: output, shape index: {}]
  %s3 = sld [smem:[#allocation0]]
  $region22: #{tpu_custom_call.1} parent=0
    _
  %s5 = ssub.s32 1, %s3
  %s6 = scalar_select 0, %s5, %s3
  $region1: #{tpu_custom_call.1} parent=0
    #allocation2 [shape = 'u8[8192]{0}', space=vmem, size = 0x2000, scoped, tag = 'input window, operand 0, single buffered']
    #allocation3 [shape = 's32[1]{0}', space=sflag, size = 0x4, scoped, tag = 'scoped memory for tpu_custom_call.1']
    #allocation4 [shape = 's32[1]{0}', space=sflag, size = 0x4, scoped, tag = 'scoped memory for tpu_custom_call.1']
    #allocation5 [shape = 'u8[8192]{0}', space=vmem, size = 0x2000, scoped, tag = 'output window, operand 0, single buffered']
    %7 = vsyncpa [#allocation3], 0
    %8 = vsyncpa [#allocation4], 0
    // Predicated region
    $region2: #{tpu_custom_call.1} parent=1 // pred_check
      _
    $region3: #{tpu_custom_call.1} parent=1 // pred_check_branch
      %10 = sbr.rel (0) target = $region5
    $region4: #{tpu_custom_call.1} parent=1 // pred_region
      %s12 = ssub.s32 256, 256
      %13 = vsyncadd [#allocation3], %s12
      %s15 = sshll.u32 [#allocation2], 4
      %s16 = int_to_ptr.vmem [resolvable:$true] %s15
      %18 = dma.hbm_to_vmem [thread:$0]  %s0, 256, %s16, [#allocation3]
    $region5: #{tpu_custom_call.1} parent=1 // pred_fallthru
      _
    // Predicated region
    $region6: #{tpu_custom_call.1} parent=1 // pred_check
      _
    $region7: #{tpu_custom_call.1} parent=1 // pred_check_branch
      %20 = sbr.rel (0) target = $region9
    $region8: #{tpu_custom_call.1} parent=1 // pred_region
      _
    $region9: #{tpu_custom_call.1} parent=1 // pred_fallthru
      _
    // Predicated region
    $region10: #{tpu_custom_call.1} parent=1 // pred_check
      _
    $region11: #{tpu_custom_call.1} parent=1 // pred_check_branch
      %22 = sbr.rel (0) target = $region13
    $region12: #{tpu_custom_call.1} parent=1 // pred_region
      %23 = dma.done [#allocation3], 256
    $region13: #{tpu_custom_call.1} parent=1 // pred_fallthru
      _
    %v24 = vld [vmem:[#allocation2] sm:$0xff]
    %v25 = vld [vmem:[#allocation2 + $0x8] sm:$0xff]
    %v26 = vld [vmem:[%s1] sm:$0xff]
    %vm27 = vcmp.gt.s32.totalorder %v26, 0
    %v28 = vsub.f32 1.0, %v24
    %v29 = vsub.f32 1.0, %v25
    %v30 = vsel %vm27, 1, 0
    %31 = vset.pattern.permute.xlu0 0
    %32 = vperm.xlu0 %31, %v30
    %v33 = vpop.permute.xlu0 %32
    %vm34 = vcmp.eq.s32.totalorder %v33, 1
    %v35 = vsel %vm34, %v28, %v24
    %v36 = vsel %vm34, %v29, %v25
    %v37 = vadd.f32 %v35, %v36
    %38 = vadd.xlane.f32.xlu0 %v37
    %v39 = vpop.xlane.xlu0 %38
    %v40 = vrcp.pop 256.0
    %v41 = vmul.f32 %v39, %v40
    %v42 = vsub.f32 %v35, %v41
    %v43 = vsub.f32 %v36, %v41
    %v44 = vmul.f32 %v42, 1.5
    %v45 = vmul.f32 %v43, 1.5
    %v46 = vadd.f32 %v44, %v41
    %v47 = vadd.f32 %v45, %v41
    %48 = vset.pattern.permute.xlu0 1
    %49 = vperm.xlu0 %48, %v30
    %v50 = vpop.permute.xlu0 %49
    %vm51 = vcmp.eq.s32.totalorder %v50, 1
    %v52 = vsel %vm51, %v46, %v35
    %v53 = vsel %vm51, %v47, %v36
    %v54 = vadd.f32 %v52, 0.2
    %v55 = vadd.f32 %v53, 0.2
    %v56 = vmax.f32 %v54, 0.0
    %v57 = vmax.f32 %v55, 0.0
    %v58 = vmin.f32 %v56, 1.0
    %v59 = vmin.f32 %v57, 1.0
    %60 = vset.pattern.permute.xlu0 2
    %61 = vperm.xlu0 %60, %v30
    %v62 = vpop.permute.xlu0 %61
    %vm63 = vcmp.eq.s32.totalorder %v62, 1
    %v64 = vsel %vm63, %v58, %v52
    %v65 = vsel %vm63, %v59, %v53
    %66 = vst [vmem:[#allocation5] sm:$0xff] %v64
    %67 = vst [vmem:[#allocation5 + $0x8] sm:$0xff] %v65
    // Predicated region
    $region14: #{tpu_custom_call.1} parent=1 // pred_check
      _
    $region15: #{tpu_custom_call.1} parent=1 // pred_check_branch
      %69 = sbr.rel (0) target = $region17
    $region16: #{tpu_custom_call.1} parent=1 // pred_region
      %s71 = ssub.s32 256, 256
      %72 = vsyncadd [#allocation4], %s71
      %s74 = sshll.u32 [#allocation5], 4
      %s75 = int_to_ptr.vmem [resolvable:$true] %s74
      %77 = dma.vmem_to_hbm [thread:$0]  %s75, 256, %s2, [#allocation4]
    $region17: #{tpu_custom_call.1} parent=1 // pred_fallthru
      _
    // Predicated region
    $region18: #{tpu_custom_call.1} parent=1 // pred_check
      _
    $region19: #{tpu_custom_call.1} parent=1 // pred_check_branch
      %79 = sbr.rel (0) target = $region21
    $region20: #{tpu_custom_call.1} parent=1 // pred_region
      %80 = dma.done [#allocation4], 256
    $region21: #{tpu_custom_call.1} parent=1 // pred_fallthru
      _
    %81 = vsyncpa [#allocation3], 1
    %82 = vsyncpa [#allocation4], 1

</llo_original>
